<compile_context>
chip_gen: v5e
topology: v5e:2x2
jax: 0.10.0
libtpu: 0.0.40
codegen_flags: <defaults>
</compile_context>

<pallas_src>
import math
import functools

import jax
import jax.numpy as jnp
from jax.experimental import pallas as pl
from jax.experimental.pallas import tpu as pltpu


# --------------------------------------------------------------------------- helpers

def _pick_tile(dim, target, quantum):
    """Largest tile <= target that is a multiple of `quantum` and divides `dim`.
    If dim <= target, use the whole dim (full-extent blocks are always legal)."""
    if dim <= target:
        return dim
    best = None
    t = quantum
    while t <= target:
        if dim % t == 0:
            best = t
        t += quantum
    # TODO(synk): pad awkward dims to the next quantum multiple (+ mask in the
    # attention kernel) instead of falling back to a full-extent block.
    return best if best is not None else dim


# --------------------------------------------------------------------------- tiled linear (x @ W^T + b), bf16 out

def _linear_kernel(x_ref, w_ref, b_ref, o_ref, acc_ref):
    k = pl.program_id(2)

    @pl.when(k == 0)
    def _():
        acc_ref[...] = jnp.zeros_like(acc_ref)

    acc_ref[...] += jnp.dot(x_ref[...].astype(jnp.bfloat16), w_ref[...],
                            preferred_element_type=jnp.float32)

    @pl.when(k == pl.num_programs(2) - 1)
    def _():
        o_ref[...] = (acc_ref[...] + b_ref[...]).astype(o_ref.dtype)


def pallas_linear(x, w_t, b, out_dtype=jnp.bfloat16):
    """PyTorch nn.Linear: x @ w_t + b.
    x:(M,K) bf16, w_t:(K,N) bf16 (pre-transposed once at init), b:(N,) f32."""
    M, K = x.shape
    N = w_t.shape[1]
    tm = _pick_tile(M, 512, 8)
    tn = _pick_tile(N, 512, 128)
    tk = K if K <= 1024 else _pick_tile(K, 512, 128)   # full-K panel when small
    grid = (M // tm, N // tn, K // tk)
    obytes = jnp.dtype(out_dtype).itemsize
    cost = pl.CostEstimate(
        flops=2 * M * N * K,
        transcendentals=0,
        bytes_accessed=M * K * x.dtype.itemsize + K * N * 2 + M * N * obytes + N * 4,
    )
    return pl.pallas_call(
        _linear_kernel,
        out_shape=jax.ShapeDtypeStruct((M, N), out_dtype),
        grid=grid,
        in_specs=[
            pl.BlockSpec((tm, tk), lambda i, j, k: (i, k)),
            pl.BlockSpec((tk, tn), lambda i, j, k: (k, j)),
            pl.BlockSpec((1, tn), lambda i, j, k: (0, j)),
        ],
        out_specs=pl.BlockSpec((tm, tn), lambda i, j, k: (i, j)),
        scratch_shapes=[pltpu.VMEM((tm, tn), jnp.float32)],
        compiler_params=pltpu.CompilerParams(
            dimension_semantics=("parallel", "parallel", "arbitrary")),
        cost_estimate=cost,
    )(x, w_t, b.reshape(1, N))


# --------------------------------------------------------------------------- RMSNorm (row-tiled, f32 math, bf16 out)

def _rmsnorm_kernel(x_ref, w_ref, o_ref, *, eps):
    x = x_ref[...].astype(jnp.float32)
    var = jnp.mean(x * x, axis=-1, keepdims=True)
    o_ref[...] = (x * jax.lax.rsqrt(var + eps) * w_ref[...]).astype(o_ref.dtype)


def pallas_rmsnorm(x, w, eps=1e-6):
    """RMSNorm over the last dim. x:(M,K) bf16, w:(K,) f32 -> bf16."""
    M, K = x.shape
    tm = _pick_tile(M, 256, 8)   # 256 keeps double-buffered blocks well inside v5e scoped VMEM
    return pl.pallas_call(
        functools.partial(_rmsnorm_kernel, eps=eps),
        out_shape=jax.ShapeDtypeStruct((M, K), jnp.bfloat16),
        grid=(M // tm,),
        in_specs=[pl.BlockSpec((tm, K), lambda i: (i, 0)),
                  pl.BlockSpec((1, K), lambda i: (0, 0))],
        out_specs=pl.BlockSpec((tm, K), lambda i: (i, 0)),
        compiler_params=pltpu.CompilerParams(dimension_semantics=("parallel",)),
    )(x, w.reshape(1, K))


# --------------------------------------------------------------------------- flash attention with fused RoPE

def _rope(x, cos, sin):
    # x*cos + rotate_half(x)*sin, rotate_half(x) = cat(-x2, x1)
    d = x.shape[-1]
    x1 = x[:, : d // 2]
    x2 = x[:, d // 2:]
    rot = jnp.concatenate([-x2, x1], axis=-1)
    return x * cos + rot * sin


def _flash_attn_kernel(qn_ref, qp_ref, kn_ref, kp_ref, v_ref,
                       cos_q_ref, sin_q_ref, cos_k_ref, sin_k_ref,
                       o_ref, m_sc, l_sc, acc_sc, *, scale):
    ki = pl.program_id(3)

    @pl.when(ki == 0)
    def _():
        m_sc[...] = jnp.full_like(m_sc, -jnp.inf)
        l_sc[...] = jnp.zeros_like(l_sc)
        acc_sc[...] = jnp.zeros_like(acc_sc)

    # q: softmax scale folded in; RoPE fused on the pe half; single MXU dot below.
    qn = qn_ref[...] * scale                                             # (tq, Dn) bf16
    qp = (_rope(qp_ref[...].astype(jnp.float32),
                cos_q_ref[...], sin_q_ref[...]) * scale).astype(jnp.bfloat16)
    q = jnp.concatenate([qn, qp], axis=-1)                               # (tq, Dn+Dr)

    kp = _rope(kp_ref[...].astype(jnp.float32),
               cos_k_ref[...], sin_k_ref[...]).astype(jnp.bfloat16)      # head-shared
    k = jnp.concatenate([kn_ref[...], kp], axis=-1)                      # (tkv, Dn+Dr)

    s = jnp.dot(q, k.T, preferred_element_type=jnp.float32)              # (tq, tkv)
    # TODO(synk): fold causal / additive attention mask into `s` (forward uses mask=None).

    m_prev = m_sc[...]
    m_new = jnp.maximum(m_prev, jnp.max(s, axis=-1, keepdims=True))
    alpha = jnp.exp(m_prev - m_new)
    p = jnp.exp(s - m_new)
    l_sc[...] = alpha * l_sc[...] + jnp.sum(p, axis=-1, keepdims=True)
    acc_sc[...] = alpha * acc_sc[...] + jnp.dot(
        p.astype(jnp.bfloat16), v_ref[...], preferred_element_type=jnp.float32)
    m_sc[...] = m_new

    @pl.when(ki == pl.num_programs(3) - 1)
    def _():
        o_ref[...] = (acc_sc[...] *
                      pl.reciprocal(l_sc[...], approx=True)).astype(o_ref.dtype)


def pallas_mla_attention(q_nope, q_pe, k_nope, k_pe, v, cos, sin, scale):
    """q_nope:(B,H,S,Dn) q_pe:(B,H,S,Dr) k_nope:(B,H,S,Dn) k_pe:(B,S,Dr) (head-
    shared, never broadcast to H) v:(B,H,S,Dv) cos/sin:(S,Dr) -> (B,H,S,Dv) bf16."""
    B, H, S, Dn = q_nope.shape
    Dr = q_pe.shape[-1]
    Dv = v.shape[-1]
    tq = _pick_tile(S, 256, 8)
    tkv = _pick_tile(S, 512, 128)
    grid = (B, H, S // tq, S // tkv)
    cost = pl.CostEstimate(
        flops=2 * B * H * S * S * (Dn + Dr + Dv),
        transcendentals=B * H * S * S,
        bytes_accessed=2 * (q_nope.size + q_pe.size + k_nope.size + k_pe.size
                            + v.size + B * H * S * Dv) + 8 * cos.size,
    )
    return pl.pallas_call(
        functools.partial(_flash_attn_kernel, scale=scale),
        out_shape=jax.ShapeDtypeStruct((B, H, S, Dv), jnp.bfloat16),
        grid=grid,
        in_specs=[
            pl.BlockSpec((None, None, tq, Dn), lambda b, h, qi, ki: (b, h, qi, 0)),
            pl.BlockSpec((None, None, tq, Dr), lambda b, h, qi, ki: (b, h, qi, 0)),
            pl.BlockSpec((None, None, tkv, Dn), lambda b, h, qi, ki: (b, h, ki, 0)),
            pl.BlockSpec((None, tkv, Dr), lambda b, h, qi, ki: (b, ki, 0)),
            pl.BlockSpec((None, None, tkv, Dv), lambda b, h, qi, ki: (b, h, ki, 0)),
            pl.BlockSpec((tq, Dr), lambda b, h, qi, ki: (qi, 0)),
            pl.BlockSpec((tq, Dr), lambda b, h, qi, ki: (qi, 0)),
            pl.BlockSpec((tkv, Dr), lambda b, h, qi, ki: (ki, 0)),
            pl.BlockSpec((tkv, Dr), lambda b, h, qi, ki: (ki, 0)),
        ],
        out_specs=pl.BlockSpec((None, None, tq, Dv),
                               lambda b, h, qi, ki: (b, h, qi, 0)),
        scratch_shapes=[pltpu.VMEM((tq, 1), jnp.float32),
                        pltpu.VMEM((tq, 1), jnp.float32),
                        pltpu.VMEM((tq, Dv), jnp.float32)],
        compiler_params=pltpu.CompilerParams(
            dimension_semantics=("parallel", "parallel", "parallel", "arbitrary")),
        cost_estimate=cost,
    )(q_nope, q_pe, k_nope, k_pe, v, cos, sin, cos, sin)


# --------------------------------------------------------------------------- params / glue

def _init_linear(key, out_features, in_features):
    # deterministic torch-Linear-like init: U(-1/sqrt(in), 1/sqrt(in))
    kw, kb = jax.random.split(key)
    bound = 1.0 / math.sqrt(in_features)
    w = jax.random.uniform(kw, (out_features, in_features), jnp.float32, -bound, bound)
    b = jax.random.uniform(kb, (out_features,), jnp.float32, -bound, bound)
    # pre-transpose ONCE (and cast to bf16 for the MXU) -> no per-forward w.T / cast
    return w.T.astype(jnp.bfloat16), b


def _split_out_features(w_t, b, n_heads, dims):
    """Split a per-head-interleaved output projection (e.g. [nope|pe] per head) into
    separate projections ONCE at init -> no per-forward XLA slice over activations."""
    K = w_t.shape[0]
    tot = sum(dims)
    w3 = w_t.reshape(K, n_heads, tot)
    b2 = b.reshape(n_heads, tot)
    parts, off = [], 0
    for d in dims:
        parts.append((w3[:, :, off:off + d].reshape(K, n_heads * d),
                      b2[:, off:off + d].reshape(n_heads * d)))
        off += d
    return parts


def init_mla_params(key, dim, n_heads, q_lora_rank, kv_lora_rank,
                    qk_nope_head_dim, qk_rope_head_dim, v_head_dim):
    qk_head_dim = qk_nope_head_dim + qk_rope_head_dim
    ks = jax.random.split(key, 5)
    wq_b = _init_linear(ks[1], n_heads * qk_head_dim, q_lora_rank)
    wq_b_nope, wq_b_pe = _split_out_features(
        *wq_b, n_heads, (qk_nope_head_dim, qk_rope_head_dim))
    wkv_b = _init_linear(ks[3], n_heads * (qk_nope_head_dim + v_head_dim), kv_lora_rank)
    wkv_b_nope, wkv_b_v = _split_out_features(
        *wkv_b, n_heads, (qk_nope_head_dim, v_head_dim))
    return {
        "wq_a": _init_linear(ks[0], q_lora_rank, dim),
        "q_norm": jnp.ones((q_lora_rank,), jnp.float32),
        "wq_b_nope": wq_b_nope,
        "wq_b_pe": wq_b_pe,
        "wkv_a": _init_linear(ks[2], kv_lora_rank + qk_rope_head_dim, dim),
        "kv_norm": jnp.ones((kv_lora_rank,), jnp.float32),
        "wkv_b_nope": wkv_b_nope,
        "wkv_b_v": wkv_b_v,
        "wo": _init_linear(ks[4], dim, n_heads * v_head_dim),
    }


def _rope_cos_sin(seq_len, dim_rope, base=10000.0):
    inv_freq = 1.0 / (base ** (jnp.arange(0, dim_rope, 2, dtype=jnp.float32) / dim_rope))
    t = jnp.arange(seq_len, dtype=jnp.float32)
    freqs = jnp.outer(t, inv_freq)                      # (seq, dim/2)
    emb = jnp.concatenate([freqs, freqs], axis=-1)      # (seq, dim)
    return jnp.cos(emb), jnp.sin(emb)


def mla_forward(params, x, *, n_heads, qk_nope_head_dim, qk_rope_head_dim,
                v_head_dim, kv_lora_rank, mask=None):
    bs, seq_len, dim = x.shape
    qk_head_dim = qk_nope_head_dim + qk_rope_head_dim
    x2 = x.reshape(bs * seq_len, dim).astype(jnp.bfloat16)   # bf16 activations end-to-end

    # ---- query path: wq_a -> RMSNorm -> (wq_b pre-split into nope / pe) ----
    cq = pallas_linear(x2, *params["wq_a"])
    cq = pallas_rmsnorm(cq, params["q_norm"])
    q_nope = pallas_linear(cq, *params["wq_b_nope"]).reshape(
        bs, seq_len, n_heads, qk_nope_head_dim)
    q_pe = pallas_linear(cq, *params["wq_b_pe"]).reshape(
        bs, seq_len, n_heads, qk_rope_head_dim)
    q_nope = jnp.transpose(q_nope, (0, 2, 1, 3))            # (B,H,S,Dn)
    q_pe = jnp.transpose(q_pe, (0, 2, 1, 3))                # (B,H,S,Dr)

    # ---- kv path: wkv_a -> split (lora / rope) ----
    kv = pallas_linear(x2, *params["wkv_a"]).reshape(
        bs, seq_len, kv_lora_rank + qk_rope_head_dim)
    kv_lora = kv[..., :kv_lora_rank].reshape(bs * seq_len, kv_lora_rank)
    k_pe = kv[..., kv_lora_rank:]                           # (B,S,Dr) head-shared

    # ---- mode == 'naive' ----
    kv_n = pallas_rmsnorm(kv_lora, params["kv_norm"])
    # --- reference forward truncates here; standard naive-MLA continuation follows ---
    k_nope = pallas_linear(kv_n, *params["wkv_b_nope"]).reshape(
        bs, seq_len, n_heads, qk_nope_head_dim)
    v = pallas_linear(kv_n, *params["wkv_b_v"]).reshape(
        bs, seq_len, n_heads, v_head_dim)
    k_nope = jnp.transpose(k_nope, (0, 2, 1, 3))            # (B,H,S,Dn)
    v = jnp.transpose(v, (0, 2, 1, 3))                      # (B,H,S,Dv)
    # TODO(synk): k_cache / v_cache writeback omitted (single-shot forward, start_pos=0).

    # ---- attention (RoPE + scale folded into the kernel) ----
    cos, sin = _rope_cos_sin(seq_len, qk_rope_head_dim)
    scale = qk_head_dim ** -0.5
    oh = pallas_mla_attention(q_nope, q_pe, k_nope, k_pe, v, cos, sin, scale)
    # TODO(synk): emit (B,S,H*Dv) directly from the attention kernel (lane-dense out
    # block) once Dv is a multiple of 128; at these head dims keep the XLA transpose.
    o = jnp.transpose(oh, (0, 2, 1, 3)).reshape(bs * seq_len, n_heads * v_head_dim)
    out = pallas_linear(o, *params["wo"], out_dtype=jnp.float32)
    return out.reshape(bs, seq_len, dim)


# --------------------------------------------------------------------------- main

if __name__ == "__main__":
    # small config consistent with the module's __init__
    dim = 32
    n_heads = 2
    q_lora_rank = 16
    kv_lora_rank = 16
    qk_nope_head_dim = 16
    qk_rope_head_dim = 8
    v_head_dim = 16
    bs, seq_len = 2, 8

    key = jax.random.PRNGKey(0)
    pkey, xkey = jax.random.split(key)
    params = init_mla_params(pkey, dim, n_heads, q_lora_rank, kv_lora_rank,
                             qk_nope_head_dim, qk_rope_head_dim, v_head_dim)
    x = jax.random.normal(xkey, (bs, seq_len, dim), jnp.float32)

    out = mla_forward(
        params, x,
        n_heads=n_heads,
        qk_nope_head_dim=qk_nope_head_dim,
        qk_rope_head_dim=qk_rope_head_dim,
        v_head_dim=v_head_dim,
        kv_lora_rank=kv_lora_rank,
        mask=None,
    )
    jax.block_until_ready(out)
    assert out.shape == (bs, seq_len, dim)
    assert bool(jnp.all(jnp.isfinite(out)))
    print("KERNEL_OK")
</pallas_src>

<mosaic_0001>
module attributes {stable_mosaic.version = 11 : i64} {
  func.func @_linear_kernel(%arg0: i32, %arg1: i32, %arg2: i32, %arg3: memref<16x32xbf16, #tpu.memory_space<vmem>>, %arg4: memref<32x16xbf16, #tpu.memory_space<vmem>>, %arg5: memref<1x16xf32, #tpu.memory_space<vmem>>, %arg6: memref<16x16xbf16, #tpu.memory_space<vmem>>, %arg7: memref<16x16xf32, #tpu.memory_space<vmem>>) attributes {dimension_semantics = [#tpu.dimension_semantics<parallel>, #tpu.dimension_semantics<parallel>, #tpu.dimension_semantics<arbitrary>], iteration_bounds = array<i64: 1, 1, 1>, scalar_prefetch = 0 : i64, scratch_operands = 1 : i64, tpu.core_type = #tpu.core_type<tc>, window_params = [{transform_indices = @transform_0, window_bounds = array<i64: 16, 32>}, {transform_indices = @transform_1, window_bounds = array<i64: 32, 16>}, {transform_indices = @transform_2, window_bounds = array<i64: 1, 16>}, {transform_indices = @transform_3, window_bounds = array<i64: 16, 16>}]} {
    %c0_i32 = arith.constant 0 : i32
    %0 = arith.cmpi eq, %arg2, %c0_i32 : i32
    %1 = arith.extui %0 : i1 to i32
    %c0_i32_0 = arith.constant 0 : i32
    %2 = arith.cmpi ne, %1, %c0_i32_0 : i32
    scf.if %2 {
      %cst_10 = arith.constant 0.000000e+00 : f32
      %12 = vector.broadcast %cst_10 : f32 to vector<16x16xf32>
      %c0_11 = arith.constant 0 : index
      %c0_12 = arith.constant 0 : index
      %13 = vector.load %arg7[%c0_11, %c0_12] : memref<16x16xf32, #tpu.memory_space<vmem>>, vector<16x16xf32>
      tpu.vector_store %arg7[%c0_11, %c0_12], %12 {strides = array<i32>} : memref<16x16xf32, #tpu.memory_space<vmem>>, vector<16x16xf32>,
    } else {
    }
    %c0 = arith.constant 0 : index
    %c0_1 = arith.constant 0 : index
    %3 = vector.load %arg7[%c0, %c0_1] : memref<16x16xf32, #tpu.memory_space<vmem>>, vector<16x16xf32>
    %c0_2 = arith.constant 0 : index
    %c0_3 = arith.constant 0 : index
    %4 = vector.load %arg3[%c0_2, %c0_3] : memref<16x32xbf16, #tpu.memory_space<vmem>>, vector<16x32xbf16>
    %c0_4 = arith.constant 0 : index
    %c0_5 = arith.constant 0 : index
    %5 = vector.load %arg4[%c0_4, %c0_5] : memref<32x16xbf16, #tpu.memory_space<vmem>>, vector<32x16xbf16>
    %cst = arith.constant dense<0.000000e+00> : vector<16x16xf32>
    %6 = tpu.matmul %4, %5, %cst {dimension_numbers = #tpu.dot_dimension_numbers<[1], [0], [0], [1], [0, 0, 1, 1], [], []>} : vector<16x32xbf16>, vector<32x16xbf16>, vector<16x16xf32> -> vector<16x16xf32>
    %7 = arith.addf %3, %6 : vector<16x16xf32>
    %c0_6 = arith.constant 0 : index
    %c0_7 = arith.constant 0 : index
    %8 = vector.load %arg7[%c0_6, %c0_7] : memref<16x16xf32, #tpu.memory_space<vmem>>, vector<16x16xf32>
    tpu.vector_store %arg7[%c0_6, %c0_7], %7 {strides = array<i32>} : memref<16x16xf32, #tpu.memory_space<vmem>>, vector<16x16xf32>,
    %c0_i32_8 = arith.constant 0 : i32
    %9 = arith.cmpi eq, %arg2, %c0_i32_8 : i32
    %10 = arith.extui %9 : i1 to i32
    %c0_i32_9 = arith.constant 0 : i32
    %11 = arith.cmpi ne, %10, %c0_i32_9 : i32
    scf.if %11 {
      %c0_10 = arith.constant 0 : index
      %c0_11 = arith.constant 0 : index
      %12 = vector.load %arg7[%c0_10, %c0_11] : memref<16x16xf32, #tpu.memory_space<vmem>>, vector<16x16xf32>
      %c0_12 = arith.constant 0 : index
      %c0_13 = arith.constant 0 : index
      %13 = vector.load %arg5[%c0_12, %c0_13] : memref<1x16xf32, #tpu.memory_space<vmem>>, vector<1x16xf32>
      %14 = vector.broadcast %13 : vector<1x16xf32> to vector<16x16xf32>
      %15 = arith.addf %12, %14 : vector<16x16xf32>
      %16 = arith.truncf %15 : vector<16x16xf32> to vector<16x16xbf16>
      %c0_14 = arith.constant 0 : index
      %c0_15 = arith.constant 0 : index
      %17 = vector.load %arg6[%c0_14, %c0_15] : memref<16x16xbf16, #tpu.memory_space<vmem>>, vector<16x16xbf16>
      tpu.vector_store %arg6[%c0_14, %c0_15], %16 {strides = array<i32>} : memref<16x16xbf16, #tpu.memory_space<vmem>>, vector<16x16xbf16>,
    } else {
    }
    return
  }
  func.func @transform_0(%arg0: i32, %arg1: i32, %arg2: i32) -> (i32, i32) {
    %c0_i32 = arith.constant 0 : i32
    return %arg0, %arg2 : i32, i32
  }
  func.func @transform_1(%arg0: i32, %arg1: i32, %arg2: i32) -> (i32, i32) {
    %c0_i32 = arith.constant 0 : i32
    return %arg2, %arg1 : i32, i32
  }
  func.func @transform_2(%arg0: i32, %arg1: i32, %arg2: i32) -> (i32, i32) {
    %c0_i32 = arith.constant 0 : i32
    %c0_i32_0 = arith.constant 0 : i32
    return %c0_i32, %arg1 : i32, i32
  }
  func.func @transform_3(%arg0: i32, %arg1: i32, %arg2: i32) -> (i32, i32) {
    %c0_i32 = arith.constant 0 : i32
    return %arg0, %arg1 : i32, i32
  }
}

</mosaic_0001>

<llo_original>
// kernel: tpu_custom_call.1
$region0: #{tpu_custom_call.1}
  #allocation0 [shape = 'u32[]', space=smem, size = 0x4, offset = 0x4, fixed_abs, tag = 'smem constant byte address 0x4 - core index']
  #allocation1 [shape = 'u32[72,128]{1,0:T(1,128)}', space=vmem, size = 0x9000, scoped, tag = 'internal scratch']
  #allocation2 [shape = 'f32[16,16]{1,0:T(8,128)}', space=vmem, size = 0x2000, scoped, tag = 'scratch operand']
  %s0 = inlined_call_operand.vmem [shape: bf16[16,32], index: 0, kind: input, shape index: {}]
  %s1 = inlined_call_operand.vmem [shape: bf16[32,16], index: 1, kind: input, shape index: {}]
  %s2 = inlined_call_operand.vmem [shape: f32[1,16], index: 2, kind: input, shape index: {}]
  %s3 = inlined_call_operand.hbm [shape: bf16[16,16], index: 3, kind: output, shape index: {}]
  %s4 = sld [smem:[#allocation0]]
  $region30: #{tpu_custom_call.1} parent=0
    _
  %s6 = ssub.s32 1, %s4
  %s7 = scalar_select 0, %s6, %s4
  $region1: #{tpu_custom_call.1} parent=0
    #allocation3 [shape = 'u8[4096]{0}', space=vmem, size = 0x1000, scoped, tag = 'output window, operand 0, single buffered']
    #allocation4 [shape = 's32[1]{0}', space=sflag, size = 0x4, scoped, tag = 'scoped memory for tpu_custom_call.1']
    %8 = vsyncpa [#allocation4], 0
    // Predicated region
    $region2: #{tpu_custom_call.1} parent=1 // pred_check
      _
    $region3: #{tpu_custom_call.1} parent=1 // pred_check_branch
      %10 = sbr.rel (0) target = $region5
    $region4: #{tpu_custom_call.1} parent=1 // pred_region
      _
    $region5: #{tpu_custom_call.1} parent=1 // pred_fallthru
      _
    // Predicated region
    $region6: #{tpu_custom_call.1} parent=1 // pred_check
      _
    $region7: #{tpu_custom_call.1} parent=1 // pred_check_branch
      %12 = sbr.rel (0) target = $region9
    $region8: #{tpu_custom_call.1} parent=1 // pred_region
      _
    $region9: #{tpu_custom_call.1} parent=1 // pred_fallthru
      _
    // Predicated region
    $region10: #{tpu_custom_call.1} parent=1 // pred_check
      _
    $region11: #{tpu_custom_call.1} parent=1 // pred_check_branch
      %14 = sbr.rel (0) target = $region13
    $region12: #{tpu_custom_call.1} parent=1 // pred_region
      _
    $region13: #{tpu_custom_call.1} parent=1 // pred_fallthru
      _
    %p16 = scmp.eq.s32.totalorder 0, 0
    // Predicated region
    $region14: #{tpu_custom_call.1} parent=1 // pred_check
      %p17 = pneg %p16
    $region15: #{tpu_custom_call.1} parent=1 // pred_check_branch
      %19 = sbr.rel (%p17) target = $region17
    $region16: #{tpu_custom_call.1} parent=1 // pred_region
      %vm20 = vcmask 130048
      %21 = vst.msk [vmem:[#allocation2] sm:$0xff] %vm20, 0.0
      %22 = vst.msk [vmem:[#allocation2 + $0x8] sm:$0xff] %vm20, 0.0
    $region17: #{tpu_custom_call.1} parent=1 // pred_fallthru
      _
    %v23 = vld [vmem:[#allocation2] sm:$0xff]
    %v24 = vld [vmem:[#allocation2 + $0x8] sm:$0xff]
    %v25 = vld [vmem:[%s0] sm:$0xf]
    %v26 = vld [vmem:[%s0 + $0x4] sm:$0xf]
    %v27 = vld [vmem:[%s1] sm:$0xf]
    %v28 = vld [vmem:[%s1 + $0x4] sm:$0xf]
    %v29 = vld [vmem:[%s1 + $0x8] sm:$0xf]
    %v30 = vld [vmem:[%s1 + $0xc] sm:$0xf]
    %v33 = vunpack.c.l.b16 %v25
    %v34 = vunpack.c.l.b16 %v26
    %v35 = vpack.c.b16 %v34, %v33
    %v40 = vunpack.c.l.b16 %v27
    %v41 = vunpack.c.l.b16 %v28
    %v42 = vunpack.c.l.b16 %v29
    %v43 = vunpack.c.l.b16 %v30
    %v44 = vpack.c.b16 %v41, %v40
    %v45 = vpack.c.b16 %v43, %v42
    %vm48 = vcmask 261120
    %v50 = vsel %vm48, %v35, 0
    %52 = vmatpush.bf16.msra.mxu0 0
    %53 = vmatpush.bf16.msra.mxu0 0
    %54 = vmatpush.bf16.msra.mxu0 0
    %55 = vmatpush.bf16.msra.mxu0 0
    %56 = vmatpush.bf16.msra.mxu0 0
    %57 = vmatpush.bf16.msra.mxu0 0
    %58 = vmatpush.bf16.msra.mxu0 %v45
    %59 = vmatpush.bf16.msra.mxu0 %v44
    %60 = vmatmul.bf16.gmra.mxu0 %v50
    %v61 = vpop.f32.mrf.mxu0
    %v62 = vadd.f32 0.0, %v61
    %v63 = vpop.f32.mrf.mxu0
    %v64 = vadd.f32 0.0, %v63
    %65 = vdwg.mxu0
    %v66 = vadd.f32 %v23, %v62
    %v67 = vadd.f32 %v24, %v64
    %vm68 = vcmask 130048
    %69 = vst.msk [vmem:[#allocation2] sm:$0xff] %vm68, %v66
    %70 = vst.msk [vmem:[#allocation2 + $0x8] sm:$0xff] %vm68, %v67
    // Predicated region
    $region18: #{tpu_custom_call.1} parent=1 // pred_check
      %p71 = pneg %p16
    $region19: #{tpu_custom_call.1} parent=1 // pred_check_branch
      %73 = sbr.rel (%p71) target = $region21
    $region20: #{tpu_custom_call.1} parent=1 // pred_region
      %v74 = vld [vmem:[#allocation2] sm:$0xff]
      %v75 = vld [vmem:[#allocation2 + $0x8] sm:$0xff]
      %v76 = vld [vmem:[%s2] sm:$0x1]
      %v78 = vperm.slane %v76, 0
      %v80 = vadd.f32 %v74, %v78
      %v81 = vadd.f32 %v75, %v78
      %v82 = vpack.c.bf16 %v80, %v80
      %v83 = vpack.c.bf16 %v81, %v81
      %vm84 = vcmask 125952
      %85 = vst.msk [vmem:[#allocation3] sm:$0xf] %vm84, %v82
      %86 = vst.msk [vmem:[#allocation3 + $0x4] sm:$0xf] %vm84, %v83
    $region21: #{tpu_custom_call.1} parent=1 // pred_fallthru
      _
    // Predicated region
    $region22: #{tpu_custom_call.1} parent=1 // pred_check
      _
    $region23: #{tpu_custom_call.1} parent=1 // pred_check_branch
      %88 = sbr.rel (0) target = $region25
    $region24: #{tpu_custom_call.1} parent=1 // pred_region
      %90 = vsyncadd [#allocation4], 0
      %s91 = sshll.u32 [#allocation3], 4
      %s92 = int_to_ptr.vmem [resolvable:$true] %s91
      %s93 = sshll.u32 %s3, 4
      %s94 = int_to_ptr.hbm [resolvable:$true] %s93
      %99 = dma.vmem_to_hbm [thread:$0]  %s92, 128, %s94, [#allocation4], 64, 64, 4
    $region25: #{tpu_custom_call.1} parent=1 // pred_fallthru
      _
    // Predicated region
    $region26: #{tpu_custom_call.1} parent=1 // pred_check
      _
    $region27: #{tpu_custom_call.1} parent=1 // pred_check_branch
      %101 = sbr.rel (0) target = $region29
    $region28: #{tpu_custom_call.1} parent=1 // pred_region
      %103 = dma.done [#allocation4], 128
    $region29: #{tpu_custom_call.1} parent=1 // pred_fallthru
      _
    %104 = vsyncpa [#allocation4], 1

</llo_original>
